<compile_context>
chip_gen: v6e
topology: v6e:2x2x1
jax: 0.10.0
libtpu: 0.0.40
codegen_flags: <defaults>
</compile_context>

<pallas_src>
import jax
import jax.numpy as jnp
from jax.experimental import pallas as pl
from jax.experimental.pallas import tpu as pltpu


_LANE = 128
# Budget for the double-buffered (sublane-padded) streaming input per call.
_STREAM_VMEM_BUDGET = 8 * 1024 * 1024
_VMEM_LIMIT_BYTES = 32 * 1024 * 1024


def _round_up(x, m):
    return (x + m - 1) // m * m


def _cdiv(a, b):
    return -(-a // b)


def _make_gram_kernel(d, tk, nk):
    """Build a kernel that accumulates G = X @ X^T over feature chunks."""
    rem = d % tk                      # valid columns in the last chunk (0 = exact)
    dims = (((1,), (1,)), ((), ()))   # contract the feature (lane) axis

    def _accum(g_ref, x):
        g_ref[...] += jax.lax.dot_general(
            x, x, dimension_numbers=dims, preferred_element_type=jnp.float32)

    def kernel(x_ref, g_ref):
        k = pl.program_id(0)

        @pl.when(k == 0)
        def _init():
            g_ref[...] = jnp.zeros_like(g_ref)

        if rem == 0:
            # Every chunk (or the single full-extent chunk) is fully valid.
            _accum(g_ref, x_ref[...])
        else:
            # The last chunk is a partial block: its out-of-bounds tail in
            # VMEM is undefined, so only the first `rem` columns are used.
            @pl.when(k < nk - 1)
            def _full():
                _accum(g_ref, x_ref[...])

            @pl.when(k == nk - 1)
            def _tail():
                _accum(g_ref, x_ref[:, :rem])

    return kernel


def _row_gram(x):
    """(b, d) -> (b, b) float32 Gram matrix x @ x.T, streaming over d."""
    b, d = x.shape
    itemsize = jnp.dtype(x.dtype).itemsize
    sublane = max(8, 32 // itemsize)        # f32 tile: 8 sublanes, bf16: 16
    padded_rows = _round_up(b, sublane)     # VMEM footprint of one (b, tk) tile

    # Largest lane-aligned chunk whose double-buffered, sublane-padded
    # footprint fits the streaming budget.
    tk_max = _STREAM_VMEM_BUDGET // (2 * padded_rows * itemsize)
    tk_max = max(_LANE, (tk_max // _LANE) * _LANE)

    if d <= tk_max:
        tk, nk = d, 1                       # single-chunk fast path
    else:
        tk, nk = tk_max, _cdiv(d, tk_max)

    return pl.pallas_call(
        _make_gram_kernel(d, tk, nk),
        out_shape=jax.ShapeDtypeStruct((b, b), jnp.float32),
        grid=(nk,),
        in_specs=[pl.BlockSpec((b, tk), lambda k: (0, k))],
        out_specs=pl.BlockSpec((b, b), lambda k: (0, 0)),
        compiler_params=pltpu.CompilerParams(
            dimension_semantics=("arbitrary",),
            vmem_limit_bytes=_VMEM_LIMIT_BYTES,
        ),
    )(x)


@jax.jit
def diff_loss(input1, input2):
    """Pallas implementation of DiffLoss.forward. Returns a scalar float32."""
    b = input1.shape[0]
    x1 = input1.reshape(b, -1)
    x2 = input2.reshape(b, -1)
    # Stream native f32/bf16 (bf16 halves HBM bytes); anything else -> f32.
    native = (jnp.dtype(jnp.float32), jnp.dtype(jnp.bfloat16))
    if jnp.dtype(x1.dtype) not in native:
        x1 = x1.astype(jnp.float32)
    if jnp.dtype(x2.dtype) not in native:
        x2 = x2.astype(jnp.float32)
    d1, d2 = x1.shape[1], x2.shape[1]

    # Each input is streamed exactly once over its own feature extent.
    g1 = _row_gram(x1)                      # (b, b) = x1 @ x1.T
    g2 = _row_gram(x2)                      # (b, b) = x2 @ x2.T

    # O(b^2) epilogue, fused into this jit: norms from the Gram diagonals,
    # weighted "trace" sum, mean.
    n1 = jnp.sqrt(jnp.diagonal(g1))
    n2 = jnp.sqrt(jnp.diagonal(g2))
    w = 1.0 / ((n1 + 1e-6) * (n2 + 1e-6))
    total = jnp.sum(g1 * g2 * (w[:, None] * w[None, :]))
    return total / (jnp.float32(d1) * jnp.float32(d2))


def _diff_loss_ref(input1, input2):
    """Direct JAX transcription of the PyTorch forward (reference)."""
    b = input1.shape[0]
    x1 = input1.reshape(b, -1).astype(jnp.float32)
    x2 = input2.reshape(b, -1).astype(jnp.float32)
    n1 = jnp.linalg.norm(x1, axis=1, keepdims=True)
    n2 = jnp.linalg.norm(x2, axis=1, keepdims=True)
    x1n = x1 / (n1 + 1e-6)
    x2n = x2 / (n2 + 1e-6)
    m = jnp.matmul(x1n.T, x2n, precision=jax.lax.Precision.HIGHEST)
    return jnp.mean(m ** 2)


def _diff_loss_gram_ref(input1, input2):
    """Equivalent BxB-Gram formulation (usable when D1*D2 is huge)."""
    b = input1.shape[0]
    x1 = input1.reshape(b, -1).astype(jnp.float32)
    x2 = input2.reshape(b, -1).astype(jnp.float32)
    n1 = jnp.linalg.norm(x1, axis=1, keepdims=True)
    n2 = jnp.linalg.norm(x2, axis=1, keepdims=True)
    x1n = x1 / (n1 + 1e-6)
    x2n = x2 / (n2 + 1e-6)
    gn1 = jnp.matmul(x1n, x1n.T, precision=jax.lax.Precision.HIGHEST)
    gn2 = jnp.matmul(x2n, x2n.T, precision=jax.lax.Precision.HIGHEST)
    return jnp.sum(gn1 * gn2) / (jnp.float32(x1.shape[1]) * jnp.float32(x2.shape[1]))


if __name__ == "__main__":
    key = jax.random.PRNGKey(0)
    k1, k2, k3, k4 = jax.random.split(key, 4)

    # Primary check: small NCHW feature maps (B=2, C=4, H=W=16), direct
    # transcription reference -> validates semantics + the Gram/trace rewrite.
    a1 = jax.random.normal(k1, (2, 4, 16, 16), dtype=jnp.float32)
    a2 = jax.random.normal(k2, (2, 4, 16, 16), dtype=jnp.float32)
    loss = jax.block_until_ready(diff_loss(a1, a2))
    ref = jax.block_until_ready(_diff_loss_ref(a1, a2))
    assert jnp.isfinite(loss), "non-finite loss (small case)"
    assert jnp.allclose(loss, ref, rtol=2e-3, atol=1e-8), (loss, ref)

    # Secondary check: exercises the streaming path (several feature chunks),
    # the ragged feature tail, a non-multiple-of-8 batch and D1 != D2.
    b1 = jax.random.normal(k3, (3, 263000), dtype=jnp.float32)
    b2 = jax.random.normal(k4, (3, 300000), dtype=jnp.float32)
    loss2 = jax.block_until_ready(diff_loss(b1, b2))
    ref2 = jax.block_until_ready(_diff_loss_gram_ref(b1, b2))
    assert jnp.isfinite(loss2), "non-finite loss (streaming case)"
    assert jnp.allclose(loss2, ref2, rtol=1e-2, atol=0.0), (loss2, ref2)

    print("KERNEL_OK")
</pallas_src>

<mosaic_0001>
module attributes {stable_mosaic.version = 11 : i64} {
  func.func @kernel(%arg0: i32, %arg1: memref<2x1024xf32, #tpu.memory_space<vmem>>, %arg2: memref<2x2xf32, #tpu.memory_space<vmem>>) attributes {dimension_semantics = [#tpu.dimension_semantics<arbitrary>], iteration_bounds = array<i64: 1>, scalar_prefetch = 0 : i64, scratch_operands = 0 : i64, tpu.core_type = #tpu.core_type<tc>, window_params = [{transform_indices = @transform_0, window_bounds = array<i64: 2, 1024>}, {pipeline_mode = #tpu.pipeline_mode<synchronous>, transform_indices = @transform_1, window_bounds = array<i64: 2, 2>}]} {
    %c0_i32 = arith.constant 0 : i32
    %0 = arith.cmpi eq, %arg0, %c0_i32 : i32
    %1 = arith.extui %0 : i1 to i32
    %c0_i32_0 = arith.constant 0 : i32
    %2 = arith.cmpi ne, %1, %c0_i32_0 : i32
    scf.if %2 {
      %cst_6 = arith.constant 0.000000e+00 : f32
      %8 = vector.broadcast %cst_6 : f32 to vector<2x2xf32>
      %c0_7 = arith.constant 0 : index
      %c0_8 = arith.constant 0 : index
      %9 = vector.load %arg2[%c0_7, %c0_8] : memref<2x2xf32, #tpu.memory_space<vmem>>, vector<2x2xf32>
      tpu.vector_store %arg2[%c0_7, %c0_8], %8 {strides = array<i32>} : memref<2x2xf32, #tpu.memory_space<vmem>>, vector<2x2xf32>,
    } else {
    }
    %c0 = arith.constant 0 : index
    %c0_1 = arith.constant 0 : index
    %3 = vector.load %arg1[%c0, %c0_1] : memref<2x1024xf32, #tpu.memory_space<vmem>>, vector<2x1024xf32>
    %c0_2 = arith.constant 0 : index
    %c0_3 = arith.constant 0 : index
    %4 = vector.load %arg2[%c0_2, %c0_3] : memref<2x2xf32, #tpu.memory_space<vmem>>, vector<2x2xf32>
    %cst = arith.constant dense<0.000000e+00> : vector<2x2xf32>
    %5 = tpu.matmul %3, %3, %cst {dimension_numbers = #tpu.dot_dimension_numbers<[1], [1], [0], [0], [0, 0, 1, 0], [], []>} : vector<2x1024xf32>, vector<2x1024xf32>, vector<2x2xf32> -> vector<2x2xf32>
    %6 = arith.addf %4, %5 : vector<2x2xf32>
    %c0_4 = arith.constant 0 : index
    %c0_5 = arith.constant 0 : index
    %7 = vector.load %arg2[%c0_4, %c0_5] : memref<2x2xf32, #tpu.memory_space<vmem>>, vector<2x2xf32>
    tpu.vector_store %arg2[%c0_4, %c0_5], %6 {strides = array<i32>} : memref<2x2xf32, #tpu.memory_space<vmem>>, vector<2x2xf32>,
    return
  }
  func.func @transform_0(%arg0: i32) -> (i32, i32) {
    %c0_i32 = arith.constant 0 : i32
    %c0_i32_0 = arith.constant 0 : i32
    return %c0_i32, %arg0 : i32, i32
  }
  func.func @transform_1(%arg0: i32) -> (i32, i32) {
    %c0_i32 = arith.constant 0 : i32
    %c0_i32_0 = arith.constant 0 : i32
    %c0_i32_1 = arith.constant 0 : i32
    return %c0_i32, %c0_i32_0 : i32, i32
  }
}

</mosaic_0001>

<llo_original>
// kernel: diff_loss.2
$region0: #{diff_loss.2}
  #allocation0 [shape = 'u32[]', space=smem, size = 0x4, offset = 0x4, fixed_abs, tag = 'smem constant byte address 0x4 - core index']
  #allocation1 [shape = 'u32[144,128]{1,0:T(1,128)}', space=vmem, size = 0x12000, scoped, tag = 'internal scratch']
  %s0 = inlined_call_operand.vmem [shape: f32[2,1024], index: 0, kind: input, shape index: {}]
  %s1 = inlined_call_operand.vmem [shape: f32[2,2], index: 1, kind: output, shape index: {}]
  %s2 = sld [smem:[#allocation0]]
  $region18: #{diff_loss.2} parent=0
    _
  %s4 = ssub.s32 1, %s2
  %s5 = scalar_select 0, %s4, %s2
  // Predicated region
  $region2: #{diff_loss.2} parent=0 // pred_check
    _
  $region3: #{diff_loss.2} parent=0 // pred_check_branch
    %7 = sbr.rel (0) target = $region5
  $region4: #{diff_loss.2} parent=0 // pred_region
    _
  $region5: #{diff_loss.2} parent=0 // pred_fallthru
    _
  %p8 = scmp.eq.s32.totalorder 0, 0
  // Predicated region
  $region6: #{diff_loss.2} parent=0 // pred_check
    %p9 = pneg %p8
  $region7: #{diff_loss.2} parent=0 // pred_check_branch
    %11 = sbr.rel (%p9) target = $region9
  $region8: #{diff_loss.2} parent=0 // pred_region
    %vm12 = vcmask 9216
    %13 = vst.msk [vmem:[%s1] sm:$0x3] %vm12, 0.0
  $region9: #{diff_loss.2} parent=0 // pred_fallthru
    _
  %v14 = vld [vmem:[%s0] sm:$0xff]
  %v15 = vld [vmem:[%s0 + $0x8] sm:$0xff]
  %v16 = vld [vmem:[%s1] sm:$0x3]
  %v19 = vcombine.high %v14, %v14
  %v21 = vunpack.c.l.s4 1983009808
  %v22 = vunpack.c.0.s8 %v21
  %v23 = vlaneseq
  %v24 = vshrl.u32 %v23, 7
  %v25 = vsub.s32 %v22, %v24
  %v26 = vrot.slane %v14, %v25
  %v28 = vunpack.c.l.s4 1983009808
  %v29 = vunpack.c.0.s8 %v28
  %v30 = vlaneseq
  %v31 = vshrl.u32 %v30, 7
  %v32 = vsub.s32 %v29, %v31
  %v33 = vrot.slane %v19, %v32
  %v34 = vcombine.high %v26, %v26
  %v35 = vcombine.high %v33, %v33
  %v36 = vcombine.high %v15, %v15
  %v38 = vunpack.c.l.s4 1983009808
  %v39 = vunpack.c.0.s8 %v38
  %v40 = vlaneseq
  %v41 = vshrl.u32 %v40, 7
  %v42 = vsub.s32 %v39, %v41
  %v43 = vrot.slane %v15, %v42
  %v45 = vunpack.c.l.s4 1983009808
  %v46 = vunpack.c.0.s8 %v45
  %v47 = vlaneseq
  %v48 = vshrl.u32 %v47, 7
  %v49 = vsub.s32 %v46, %v48
  %v50 = vrot.slane %v36, %v49
  %v51 = vcombine.high %v43, %v43
  %v52 = vcombine.high %v50, %v50
  %61 = vmatprep.subr.mxu0 0.0
  %62 = vmatpush1.xpose.msra.mxu0 0.0
  %63 = vmatprep.subr.mxu0 0.0
  %64 = vmatpush1.xpose.msra.mxu0 0.0
  %65 = vmatprep.subr.mxu0 0.0
  %66 = vmatpush1.xpose.msra.mxu0 0.0
  %67 = vmatprep.subr.mxu0 0.0
  %68 = vmatpush1.xpose.msra.mxu0 0.0
  %69 = vmatprep.subr.mxu0 0.0
  %70 = vmatpush1.xpose.msra.mxu0 0.0
  %71 = vmatprep.subr.mxu0 0.0
  %72 = vmatpush1.xpose.msra.mxu0 0.0
  %73 = vmatprep.subr.mxu0 0.0
  %74 = vmatpush1.xpose.msra.mxu0 0.0
  %75 = vmatprep.subr.mxu0 0.0
  %76 = vmatpush1.xpose.msra.mxu0 0.0
  %77 = vmatprep.subr.mxu0 0.0
  %78 = vmatpush1.xpose.msra.mxu0 0.0
  %79 = vmatprep.subr.mxu0 0.0
  %80 = vmatpush1.xpose.msra.mxu0 0.0
  %81 = vmatprep.subr.mxu0 0.0
  %82 = vmatpush1.xpose.msra.mxu0 0.0
  %83 = vmatprep.subr.mxu0 0.0
  %84 = vmatpush1.xpose.msra.mxu0 0.0
  %85 = vmatprep.subr.mxu0 0.0
  %86 = vmatpush1.xpose.msra.mxu0 0.0
  %87 = vmatprep.subr.mxu0 0.0
  %88 = vmatpush1.xpose.msra.mxu0 0.0
  %89 = vmatprep.subr.mxu0 0.0
  %90 = vmatpush1.xpose.msra.mxu0 0.0
  %91 = vmatprep.subr.mxu0 %v34
  %92 = vmatpush1.xpose.msra.mxu0 %v26
  %93 = vmatprep.subr.mxu0 0.0
  %94 = vmatpush2.xpose.msra.mxu0 0.0
  %95 = vmatprep.subr.mxu0 0.0
  %96 = vmatpush2.xpose.msra.mxu0 0.0
  %97 = vmatprep.subr.mxu0 0.0
  %98 = vmatpush2.xpose.msra.mxu0 0.0
  %99 = vmatprep.subr.mxu0 0.0
  %100 = vmatpush2.xpose.msra.mxu0 0.0
  %101 = vmatprep.subr.mxu0 0.0
  %102 = vmatpush2.xpose.msra.mxu0 0.0
  %103 = vmatprep.subr.mxu0 0.0
  %104 = vmatpush2.xpose.msra.mxu0 0.0
  %105 = vmatprep.subr.mxu0 0.0
  %106 = vmatpush2.xpose.msra.mxu0 0.0
  %107 = vmatprep.subr.mxu0 0.0
  %108 = vmatpush2.xpose.msra.mxu0 0.0
  %109 = vmatprep.subr.mxu0 0.0
  %110 = vmatpush2.xpose.msra.mxu0 0.0
  %111 = vmatprep.subr.mxu0 0.0
  %112 = vmatpush2.xpose.msra.mxu0 0.0
  %113 = vmatprep.subr.mxu0 0.0
  %114 = vmatpush2.xpose.msra.mxu0 0.0
  %115 = vmatprep.subr.mxu0 0.0
  %116 = vmatpush2.xpose.msra.mxu0 0.0
  %117 = vmatprep.subr.mxu0 0.0
  %118 = vmatpush2.xpose.msra.mxu0 0.0
  %119 = vmatprep.subr.mxu0 0.0
  %120 = vmatpush2.xpose.msra.mxu0 0.0
  %121 = vmatprep.subr.mxu0 0.0
  %122 = vmatpush2.xpose.msra.mxu0 0.0
  %123 = vmatprep.subr.mxu0 0.0
  %124 = vmatpush2.xpose.msra.mxu0 0.0
  %125 = vmatprep.mubr.f32.mxu0 %v34
  %126 = vmatmul.mubr.f32.gmra.mxu0 %v26
  %v127 = vpop.f32.mrf.mxu0
  %v128 = vadd.f32 0.0, %v127
  %v129 = vpop.f32.mrf.mxu0
  %130 = vdwg.mxu0
  %131 = vmatprep.subr.mxu0 0.0
  %132 = vmatpush1.xpose.msra.mxu0 0.0
  %133 = vmatprep.subr.mxu0 0.0
  %134 = vmatpush1.xpose.msra.mxu0 0.0
  %135 = vmatprep.subr.mxu0 0.0
  %136 = vmatpush1.xpose.msra.mxu0 0.0
  %137 = vmatprep.subr.mxu0 0.0
  %138 = vmatpush1.xpose.msra.mxu0 0.0
  %139 = vmatprep.subr.mxu0 0.0
  %140 = vmatpush1.xpose.msra.mxu0 0.0
  %141 = vmatprep.subr.mxu0 0.0
  %142 = vmatpush1.xpose.msra.mxu0 0.0
  %143 = vmatprep.subr.mxu0 0.0
  %144 = vmatpush1.xpose.msra.mxu0 0.0
  %145 = vmatprep.subr.mxu0 0.0
  %146 = vmatpush1.xpose.msra.mxu0 0.0
  %147 = vmatprep.subr.mxu0 0.0
  %148 = vmatpush1.xpose.msra.mxu0 0.0
  %149 = vmatprep.subr.mxu0 0.0
  %150 = vmatpush1.xpose.msra.mxu0 0.0
  %151 = vmatprep.subr.mxu0 0.0
  %152 = vmatpush1.xpose.msra.mxu0 0.0
  %153 = vmatprep.subr.mxu0 0.0
  %154 = vmatpush1.xpose.msra.mxu0 0.0
  %155 = vmatprep.subr.mxu0 0.0
  %156 = vmatpush1.xpose.msra.mxu0 0.0
  %157 = vmatprep.subr.mxu0 0.0
  %158 = vmatpush1.xpose.msra.mxu0 0.0
  %159 = vmatprep.subr.mxu0 0.0
  %160 = vmatpush1.xpose.msra.mxu0 0.0
  %161 = vmatprep.subr.mxu0 %v35
  %162 = vmatpush1.xpose.msra.mxu0 %v33
  %163 = vmatprep.subr.mxu0 0.0
  %164 = vmatpush2.xpose.msra.mxu0 0.0
  %165 = vmatprep.subr.mxu0 0.0
  %166 = vmatpush2.xpose.msra.mxu0 0.0
  %167 = vmatprep.subr.mxu0 0.0
  %168 = vmatpush2.xpose.msra.mxu0 0.0
  %169 = vmatprep.subr.mxu0 0.0
  %170 = vmatpush2.xpose.msra.mxu0 0.0
  %171 = vmatprep.subr.mxu0 0.0
  %172 = vmatpush2.xpose.msra.mxu0 0.0
  %173 = vmatprep.subr.mxu0 0.0
  %174 = vmatpush2.xpose.msra.mxu0 0.0
  %175 = vmatprep.subr.mxu0 0.0
  %176 = vmatpush2.xpose.msra.mxu0 0.0
  %177 = vmatprep.subr.mxu0 0.0
  %178 = vmatpush2.xpose.msra.mxu0 0.0
  %179 = vmatprep.subr.mxu0 0.0
  %180 = vmatpush2.xpose.msra.mxu0 0.0
  %181 = vmatprep.subr.mxu0 0.0
  %182 = vmatpush2.xpose.msra.mxu0 0.0
  %183 = vmatprep.subr.mxu0 0.0
  %184 = vmatpush2.xpose.msra.mxu0 0.0
  %185 = vmatprep.subr.mxu0 0.0
  %186 = vmatpush2.xpose.msra.mxu0 0.0
  %187 = vmatprep.subr.mxu0 0.0
  %188 = vmatpush2.xpose.msra.mxu0 0.0
  %189 = vmatprep.subr.mxu0 0.0
  %190 = vmatpush2.xpose.msra.mxu0 0.0
  %191 = vmatprep.subr.mxu0 0.0
  %192 = vmatpush2.xpose.msra.mxu0 0.0
  %193 = vmatprep.subr.mxu0 0.0
  %194 = vmatpush2.xpose.msra.mxu0 0.0
  %195 = vmatprep.mubr.f32.mxu0 %v35
  %196 = vmatmul.mubr.f32.gmra.mxu0 %v33
  %v197 = vpop.f32.mrf.mxu0
  %v198 = vadd.f32 %v128, %v197
  %v199 = vpop.f32.mrf.mxu0
  %200 = vdwg.mxu0
  %201 = vmatprep.subr.mxu0 0.0
  %202 = vmatpush1.xpose.msra.mxu0 0.0
  %203 = vmatprep.subr.mxu0 0.0
  %204 = vmatpush1.xpose.msra.mxu0 0.0
  %205 = vmatprep.subr.mxu0 0.0
  %206 = vmatpush1.xpose.msra.mxu0 0.0
  %207 = vmatprep.subr.mxu0 0.0
  %208 = vmatpush1.xpose.msra.mxu0 0.0
  %209 = vmatprep.subr.mxu0 0.0
  %210 = vmatpush1.xpose.msra.mxu0 0.0
  %211 = vmatprep.subr.mxu0 0.0
  %212 = vmatpush1.xpose.msra.mxu0 0.0
  %213 = vmatprep.subr.mxu0 0.0
  %214 = vmatpush1.xpose.msra.mxu0 0.0
  %215 = vmatprep.subr.mxu0 0.0
  %216 = vmatpush1.xpose.msra.mxu0 0.0
  %217 = vmatprep.subr.mxu0 0.0
  %218 = vmatpush1.xpose.msra.mxu0 0.0
  %219 = vmatprep.subr.mxu0 0.0
  %220 = vmatpush1.xpose.msra.mxu0 0.0
  %221 = vmatprep.subr.mxu0 0.0
  %222 = vmatpush1.xpose.msra.mxu0 0.0
  %223 = vmatprep.subr.mxu0 0.0
  %224 = vmatpush1.xpose.msra.mxu0 0.0
  %225 = vmatprep.subr.mxu0 0.0
  %226 = vmatpush1.xpose.msra.mxu0 0.0
  %227 = vmatprep.subr.mxu0 0.0
  %228 = vmatpush1.xpose.msra.mxu0 0.0
  %229 = vmatprep.subr.mxu0 0.0
  %230 = vmatpush1.xpose.msra.mxu0 0.0
  %231 = vmatprep.subr.mxu0 %v51
  %232 = vmatpush1.xpose.msra.mxu0 %v43
  %233 = vmatprep.subr.mxu0 0.0
  %234 = vmatpush2.xpose.msra.mxu0 0.0
  %235 = vmatprep.subr.mxu0 0.0
  %236 = vmatpush2.xpose.msra.mxu0 0.0
  %237 = vmatprep.subr.mxu0 0.0
  %238 = vmatpush2.xpose.msra.mxu0 0.0
  %239 = vmatprep.subr.mxu0 0.0
  %240 = vmatpush2.xpose.msra.mxu0 0.0
  %241 = vmatprep.subr.mxu0 0.0
  %242 = vmatpush2.xpose.msra.mxu0 0.0
  %243 = vmatprep.subr.mxu0 0.0
  %244 = vmatpush2.xpose.msra.mxu0 0.0
  %245 = vmatprep.subr.mxu0 0.0
  %246 = vmatpush2.xpose.msra.mxu0 0.0
  %247 = vmatprep.subr.mxu0 0.0
  %248 = vmatpush2.xpose.msra.mxu0 0.0
  %249 = vmatprep.subr.mxu0 0.0
  %250 = vmatpush2.xpose.msra.mxu0 0.0
  %251 = vmatprep.subr.mxu0 0.0
  %252 = vmatpush2.xpose.msra.mxu0 0.0
  %253 = vmatprep.subr.mxu0 0.0
  %254 = vmatpush2.xpose.msra.mxu0 0.0
  %255 = vmatprep.subr.mxu0 0.0
  %256 = vmatpush2.xpose.msra.mxu0 0.0
  %257 = vmatprep.subr.mxu0 0.0
  %258 = vmatpush2.xpose.msra.mxu0 0.0
  %259 = vmatprep.subr.mxu0 0.0
  %260 = vmatpush2.xpose.msra.mxu0 0.0
  %261 = vmatprep.subr.mxu0 0.0
  %262 = vmatpush2.xpose.msra.mxu0 0.0
  %263 = vmatprep.subr.mxu0 0.0
  %264 = vmatpush2.xpose.msra.mxu0 0.0
  %265 = vmatprep.mubr.f32.mxu0 %v51
  %266 = vmatmul.mubr.f32.gmra.mxu0 %v43
  %v267 = vpop.f32.mrf.mxu0
  %v268 = vadd.f32 %v198, %v267
  %v269 = vpop.f32.mrf.mxu0
  %270 = vdwg.mxu0
  %271 = vmatprep.subr.mxu0 0.0
  %272 = vmatpush1.xpose.msra.mxu0 0.0
  %273 = vmatprep.subr.mxu0 0.0
  %274 = vmatpush1.xpose.msra.mxu0 0.0
  %275 = vmatprep.subr.mxu0 0.0
  %276 = vmatpush1.xpose.msra.mxu0 0.0
  %277 = vmatprep.subr.mxu0 0.0
  %278 = vmatpush1.xpose.msra.mxu0 0.0
  %279 = vmatprep.subr.mxu0 0.0
  %280 = vmatpush1.xpose.msra.mxu0 0.0
  %281 = vmatprep.subr.mxu0 0.0
  %282 = vmatpush1.xpose.msra.mxu0 0.0
  %283 = vmatprep.subr.mxu0 0.0
  %284 = vmatpush1.xpose.msra.mxu0 0.0
  %285 = vmatprep.subr.mxu0 0.0
  %286 = vmatpush1.xpose.msra.mxu0 0.0
  %287 = vmatprep.subr.mxu0 0.0
  %288 = vmatpush1.xpose.msra.mxu0 0.0
  %289 = vmatprep.subr.mxu0 0.0
  %290 = vmatpush1.xpose.msra.mxu0 0.0
  %291 = vmatprep.subr.mxu0 0.0
  %292 = vmatpush1.xpose.msra.mxu0 0.0
  %293 = vmatprep.subr.mxu0 0.0
  %294 = vmatpush1.xpose.msra.mxu0 0.0
  %295 = vmatprep.subr.mxu0 0.0
  %296 = vmatpush1.xpose.msra.mxu0 0.0
  %297 = vmatprep.subr.mxu0 0.0
  %298 = vmatpush1.xpose.msra.mxu0 0.0
  %299 = vmatprep.subr.mxu0 0.0
  %300 = vmatpush1.xpose.msra.mxu0 0.0
  %301 = vmatprep.subr.mxu0 %v52
  %302 = vmatpush1.xpose.msra.mxu0 %v50
  %303 = vmatprep.subr.mxu0 0.0
  %304 = vmatpush2.xpose.msra.mxu0 0.0
  %305 = vmatprep.subr.mxu0 0.0
  %306 = vmatpush2.xpose.msra.mxu0 0.0
  %307 = vmatprep.subr.mxu0 0.0
  %308 = vmatpush2.xpose.msra.mxu0 0.0
  %309 = vmatprep.subr.mxu0 0.0
  %310 = vmatpush2.xpose.msra.mxu0 0.0
  %311 = vmatprep.subr.mxu0 0.0
  %312 = vmatpush2.xpose.msra.mxu0 0.0
  %313 = vmatprep.subr.mxu0 0.0
  %314 = vmatpush2.xpose.msra.mxu0 0.0
  %315 = vmatprep.subr.mxu0 0.0
  %316 = vmatpush2.xpose.msra.mxu0 0.0
  %317 = vmatprep.subr.mxu0 0.0
  %318 = vmatpush2.xpose.msra.mxu0 0.0
  %319 = vmatprep.subr.mxu0 0.0
  %320 = vmatpush2.xpose.msra.mxu0 0.0
  %321 = vmatprep.subr.mxu0 0.0
  %322 = vmatpush2.xpose.msra.mxu0 0.0
  %323 = vmatprep.subr.mxu0 0.0
  %324 = vmatpush2.xpose.msra.mxu0 0.0
  %325 = vmatprep.subr.mxu0 0.0
  %326 = vmatpush2.xpose.msra.mxu0 0.0
  %327 = vmatprep.subr.mxu0 0.0
  %328 = vmatpush2.xpose.msra.mxu0 0.0
  %329 = vmatprep.subr.mxu0 0.0
  %330 = vmatpush2.xpose.msra.mxu0 0.0
  %331 = vmatprep.subr.mxu0 0.0
  %332 = vmatpush2.xpose.msra.mxu0 0.0
  %333 = vmatprep.subr.mxu0 0.0
  %334 = vmatpush2.xpose.msra.mxu0 0.0
  %335 = vmatprep.mubr.f32.mxu0 %v52
  %336 = vmatmul.mubr.f32.gmra.mxu0 %v50
  %v337 = vpop.f32.mrf.mxu0
  %v338 = vadd.f32 %v268, %v337
  %v339 = vpop.f32.mrf.mxu0
  %340 = vdwg.mxu0
  %v341 = vadd.f32 %v16, %v338
  %vm342 = vcmask 9216
  %343 = vst.msk [vmem:[%s1] sm:$0x3] %vm342, %v341
  // Predicated region
  $region10: #{diff_loss.2} parent=0 // pred_check
    _
  $region11: #{diff_loss.2} parent=0 // pred_check_branch
    %345 = sbr.rel (0) target = $region13
  $region12: #{diff_loss.2} parent=0 // pred_region
    _
  $region13: #{diff_loss.2} parent=0 // pred_fallthru
    _
  // Predicated region
  $region14: #{diff_loss.2} parent=0 // pred_check
    _
  $region15: #{diff_loss.2} parent=0 // pred_check_branch
    %347 = sbr.rel (0) target = $region17
  $region16: #{diff_loss.2} parent=0 // pred_region
    _
  $region17: #{diff_loss.2} parent=0 // pred_fallthru
    _

</llo_original>
